<compile_context>
chip_gen: v7x
topology: tpu7x:2x2x1
jax: 0.10.0
libtpu: 0.0.40
codegen_flags: <defaults>
</compile_context>

<pallas_src>
import functools
import math

import jax
import jax.numpy as jnp
from jax import lax
from jax.experimental import pallas as pl
from jax.experimental.pallas import tpu as pltpu

_LANE = 512              # lane width: multiple of 128 -> dense stores
_MAX_BLOCK_ROWS = 1024   # (1024, 512) f32 = 2 MiB/buffer -> safe on v7x (64 MiB VMEM)


def _i32(c):
    """Python uint32 constant -> equivalent two's-complement int32 scalar."""
    c &= 0xFFFFFFFF
    if c >= (1 << 31):
        c -= 1 << 32
    return jnp.int32(c)


def _srl(x, k):
    """Logical right shift on int32 (arithmetic shift, then mask off sign bits)."""
    return (x >> k) & ((1 << (32 - k)) - 1)


def _mix32(h):
    """lowbias32: high-avalanche 32-bit integer mixer (wrapping int32 arithmetic)."""
    h = h ^ _srl(h, 16)
    h = h * _i32(0x7FEB352D)
    h = h ^ _srl(h, 15)
    h = h * _i32(0x846CA68B)
    h = h ^ _srl(h, 16)
    return h


def _bits_to_uniform(bits):
    """int32 random bits -> f32 uniform strictly inside (0, 1)."""
    top24 = _srl(bits, 8).astype(jnp.float32)          # < 2^24, exact in f32
    return (top24 + 0.5) * jnp.float32(1.0 / 16777216.0)


def _gaussian_noise_kernel(seed_ref, x_ref, o_ref, *, sigma, block_rows, lane):
    seed = seed_ref[0]
    # Global flat element index of every element of this tile: counter-based RNG
    # gives distinct noise per tile and identical noise regardless of tiling.
    row = lax.broadcasted_iota(jnp.int32, (block_rows, lane), 0)
    col = lax.broadcasted_iota(jnp.int32, (block_rows, lane), 1)
    gidx = (pl.program_id(0) * block_rows + row) * lane + col

    # Two decorrelated bit streams -> Box-Muller standard normal.
    b1 = _mix32(gidx * _i32(0x9E3779B1) + seed)
    b2 = _mix32((gidx ^ _i32(0x3243F6A9)) * _i32(0xC2B2AE3D)
                + seed * _i32(0x27D4EB2F) + _i32(0x165667B1))
    u1 = _bits_to_uniform(b1)
    u2 = _bits_to_uniform(b2)
    # TODO(synk): on v7x, if the single EUP slot (log/sqrt/cos) ever binds, swap
    # Box-Muller for a polynomial inverse-CDF / sum-of-uniforms approximation.
    noise = jnp.sqrt(-2.0 * jnp.log(u1)) * jnp.cos(jnp.float32(2.0 * math.pi) * u2)

    o_ref[...] = (x_ref[...].astype(jnp.float32)
                  + jnp.float32(sigma) * noise).astype(o_ref.dtype)


def gaussian_noise(x, sigma, seed, training=True):
    """Pallas equivalent of GaussianNoise.forward.

    Eval mode (training=False) or sigma == 0 is the identity (matches PyTorch).
    """
    if (not training) or sigma == 0:
        return x

    orig_shape = x.shape
    flat = x.reshape(-1)
    n = flat.size

    lane = _LANE
    rows_needed = -(-n // lane)                       # ceil(n / lane)
    block_rows = min(_MAX_BLOCK_ROWS, rows_needed)
    if block_rows < rows_needed:
        block_rows = max(8, (block_rows // 8) * 8)    # keep (8,128) tiling alignment
    grid_rows = -(-rows_needed // block_rows)
    rows_total = grid_rows * block_rows
    n_pad = rows_total * lane

    if n_pad != n:
        flat = jnp.pad(flat, (0, n_pad - n))
    x2 = flat.reshape(rows_total, lane)

    seed_arr = jnp.asarray([seed], dtype=jnp.int32)
    itemsize = jnp.dtype(x.dtype).itemsize
    cost = pl.CostEstimate(
        flops=40 * n_pad,                  # hash + Box-Muller arithmetic (rough)
        transcendentals=3 * n_pad,         # log, sqrt, cos per element
        bytes_accessed=2 * n_pad * itemsize,
    )

    out2 = pl.pallas_call(
        functools.partial(_gaussian_noise_kernel, sigma=float(sigma),
                          block_rows=block_rows, lane=lane),
        out_shape=jax.ShapeDtypeStruct((rows_total, lane), x2.dtype),
        grid_spec=pltpu.PrefetchScalarGridSpec(
            num_scalar_prefetch=1,                              # seed lands in SMEM
            grid=(grid_rows,),
            in_specs=[pl.BlockSpec((block_rows, lane), lambda i, s: (i, 0))],
            out_specs=pl.BlockSpec((block_rows, lane), lambda i, s: (i, 0)),
        ),
        compiler_params=pltpu.CompilerParams(
            dimension_semantics=("parallel",)),                 # 2 TCs on v7x
        cost_estimate=cost,
        input_output_aliases={1: 0},                            # reuse x's buffer
    )(seed_arr, x2)

    return out2.reshape(-1)[:n].reshape(orig_shape)


if __name__ == "__main__":
    key = jax.random.PRNGKey(0)
    # NCHW input, consistent with typical conv feature maps.
    x = jax.random.normal(key, (2, 4, 16, 16), dtype=jnp.float32)

    sigma = 0.1
    y = gaussian_noise(x, sigma=sigma, seed=1234, training=True)
    y = jax.block_until_ready(y)

    # Sanity checks: same shape/dtype, zero-mean noise of ~sigma scale.
    assert y.shape == x.shape and y.dtype == x.dtype
    diff = y - x
    assert float(jnp.abs(diff).max()) > 0.0            # noise actually added
    assert abs(float(jnp.mean(diff))) < 0.05           # ~zero mean
    assert 0.03 < float(jnp.std(diff)) < 0.3           # ~sigma magnitude

    # Eval mode is the identity.
    y_eval = gaussian_noise(x, sigma=sigma, seed=1234, training=False)
    assert bool(jnp.all(y_eval == x))

    print("KERNEL_OK")
</pallas_src>

<mosaic_0001>
module attributes {stable_mosaic.version = 11 : i64} {
  func.func @_gaussian_noise_kernel(%arg0: i32, %arg1: memref<1xi32, #tpu.memory_space<smem>>, %arg2: memref<4x512xf32, #tpu.memory_space<vmem>>, %arg3: memref<4x512xf32, #tpu.memory_space<vmem>>) attributes {dimension_semantics = [#tpu.dimension_semantics<parallel>], iteration_bounds = array<i64: 1>, scalar_prefetch = 1 : i64, scratch_operands = 0 : i64, tpu.core_type = #tpu.core_type<tc>, window_params = [{transform_indices = @transform_0, window_bounds = array<i64: 4, 512>}, {transform_indices = @transform_1, window_bounds = array<i64: 4, 512>}]} {
    %c0 = arith.constant 0 : index
    %0 = memref.load %arg1[%c0] : memref<1xi32, #tpu.memory_space<smem>>
    %1 = tpu.iota {dimensions = array<i32: 0>} : vector<4x512xi32>
    %2 = tpu.iota {dimensions = array<i32: 1>} : vector<4x512xi32>
    %c4_i32 = arith.constant 4 : i32
    %3 = arith.muli %arg0, %c4_i32 : i32
    %4 = vector.broadcast %3 : i32 to vector<4x512xi32>
    %5 = arith.addi %4, %1 : vector<4x512xi32>
    %c512_i32 = arith.constant 512 : i32
    %6 = vector.broadcast %c512_i32 : i32 to vector<4x512xi32>
    %7 = arith.muli %5, %6 : vector<4x512xi32>
    %8 = arith.addi %7, %2 : vector<4x512xi32>
    %c-1640531535_i32 = arith.constant -1640531535 : i32
    %9 = vector.broadcast %c-1640531535_i32 : i32 to vector<4x512xi32>
    %10 = arith.muli %8, %9 : vector<4x512xi32>
    %11 = vector.broadcast %0 : i32 to vector<4x512xi32>
    %12 = arith.addi %10, %11 : vector<4x512xi32>
    %c16_i32 = arith.constant 16 : i32
    %13 = vector.broadcast %c16_i32 : i32 to vector<4x512xi32>
    %14 = arith.shrsi %12, %13 : vector<4x512xi32>
    %c65535_i32 = arith.constant 65535 : i32
    %15 = vector.broadcast %c65535_i32 : i32 to vector<4x512xi32>
    %16 = arith.andi %14, %15 : vector<4x512xi32>
    %17 = arith.xori %12, %16 : vector<4x512xi32>
    %c2146121005_i32 = arith.constant 2146121005 : i32
    %18 = vector.broadcast %c2146121005_i32 : i32 to vector<4x512xi32>
    %19 = arith.muli %17, %18 : vector<4x512xi32>
    %c15_i32 = arith.constant 15 : i32
    %20 = vector.broadcast %c15_i32 : i32 to vector<4x512xi32>
    %21 = arith.shrsi %19, %20 : vector<4x512xi32>
    %c131071_i32 = arith.constant 131071 : i32
    %22 = vector.broadcast %c131071_i32 : i32 to vector<4x512xi32>
    %23 = arith.andi %21, %22 : vector<4x512xi32>
    %24 = arith.xori %19, %23 : vector<4x512xi32>
    %c-2073254261_i32 = arith.constant -2073254261 : i32
    %25 = vector.broadcast %c-2073254261_i32 : i32 to vector<4x512xi32>
    %26 = arith.muli %24, %25 : vector<4x512xi32>
    %c16_i32_0 = arith.constant 16 : i32
    %27 = vector.broadcast %c16_i32_0 : i32 to vector<4x512xi32>
    %28 = arith.shrsi %26, %27 : vector<4x512xi32>
    %c65535_i32_1 = arith.constant 65535 : i32
    %29 = vector.broadcast %c65535_i32_1 : i32 to vector<4x512xi32>
    %30 = arith.andi %28, %29 : vector<4x512xi32>
    %31 = arith.xori %26, %30 : vector<4x512xi32>
    %c843314857_i32 = arith.constant 843314857 : i32
    %32 = vector.broadcast %c843314857_i32 : i32 to vector<4x512xi32>
    %33 = arith.xori %8, %32 : vector<4x512xi32>
    %c-1028477379_i32 = arith.constant -1028477379 : i32
    %34 = vector.broadcast %c-1028477379_i32 : i32 to vector<4x512xi32>
    %35 = arith.muli %33, %34 : vector<4x512xi32>
    %c668265263_i32 = arith.constant 668265263 : i32
    %36 = arith.muli %0, %c668265263_i32 : i32
    %37 = vector.broadcast %36 : i32 to vector<4x512xi32>
    %38 = arith.addi %35, %37 : vector<4x512xi32>
    %c374761393_i32 = arith.constant 374761393 : i32
    %39 = vector.broadcast %c374761393_i32 : i32 to vector<4x512xi32>
    %40 = arith.addi %38, %39 : vector<4x512xi32>
    %c16_i32_2 = arith.constant 16 : i32
    %41 = vector.broadcast %c16_i32_2 : i32 to vector<4x512xi32>
    %42 = arith.shrsi %40, %41 : vector<4x512xi32>
    %c65535_i32_3 = arith.constant 65535 : i32
    %43 = vector.broadcast %c65535_i32_3 : i32 to vector<4x512xi32>
    %44 = arith.andi %42, %43 : vector<4x512xi32>
    %45 = arith.xori %40, %44 : vector<4x512xi32>
    %c2146121005_i32_4 = arith.constant 2146121005 : i32
    %46 = vector.broadcast %c2146121005_i32_4 : i32 to vector<4x512xi32>
    %47 = arith.muli %45, %46 : vector<4x512xi32>
    %c15_i32_5 = arith.constant 15 : i32
    %48 = vector.broadcast %c15_i32_5 : i32 to vector<4x512xi32>
    %49 = arith.shrsi %47, %48 : vector<4x512xi32>
    %c131071_i32_6 = arith.constant 131071 : i32
    %50 = vector.broadcast %c131071_i32_6 : i32 to vector<4x512xi32>
    %51 = arith.andi %49, %50 : vector<4x512xi32>
    %52 = arith.xori %47, %51 : vector<4x512xi32>
    %c-2073254261_i32_7 = arith.constant -2073254261 : i32
    %53 = vector.broadcast %c-2073254261_i32_7 : i32 to vector<4x512xi32>
    %54 = arith.muli %52, %53 : vector<4x512xi32>
    %c16_i32_8 = arith.constant 16 : i32
    %55 = vector.broadcast %c16_i32_8 : i32 to vector<4x512xi32>
    %56 = arith.shrsi %54, %55 : vector<4x512xi32>
    %c65535_i32_9 = arith.constant 65535 : i32
    %57 = vector.broadcast %c65535_i32_9 : i32 to vector<4x512xi32>
    %58 = arith.andi %56, %57 : vector<4x512xi32>
    %59 = arith.xori %54, %58 : vector<4x512xi32>
    %c8_i32 = arith.constant 8 : i32
    %60 = vector.broadcast %c8_i32 : i32 to vector<4x512xi32>
    %61 = arith.shrsi %31, %60 : vector<4x512xi32>
    %c16777215_i32 = arith.constant 16777215 : i32
    %62 = vector.broadcast %c16777215_i32 : i32 to vector<4x512xi32>
    %63 = arith.andi %61, %62 : vector<4x512xi32>
    %64 = arith.sitofp %63 : vector<4x512xi32> to vector<4x512xf32>
    %cst = arith.constant 5.000000e-01 : f32
    %65 = vector.broadcast %cst : f32 to vector<4x512xf32>
    %66 = arith.addf %64, %65 : vector<4x512xf32>
    %cst_10 = arith.constant 5.96046448E-8 : f32
    %67 = vector.broadcast %cst_10 : f32 to vector<4x512xf32>
    %68 = arith.mulf %66, %67 : vector<4x512xf32>
    %c8_i32_11 = arith.constant 8 : i32
    %69 = vector.broadcast %c8_i32_11 : i32 to vector<4x512xi32>
    %70 = arith.shrsi %59, %69 : vector<4x512xi32>
    %c16777215_i32_12 = arith.constant 16777215 : i32
    %71 = vector.broadcast %c16777215_i32_12 : i32 to vector<4x512xi32>
    %72 = arith.andi %70, %71 : vector<4x512xi32>
    %73 = arith.sitofp %72 : vector<4x512xi32> to vector<4x512xf32>
    %cst_13 = arith.constant 5.000000e-01 : f32
    %74 = vector.broadcast %cst_13 : f32 to vector<4x512xf32>
    %75 = arith.addf %73, %74 : vector<4x512xf32>
    %cst_14 = arith.constant 5.96046448E-8 : f32
    %76 = vector.broadcast %cst_14 : f32 to vector<4x512xf32>
    %77 = arith.mulf %75, %76 : vector<4x512xf32>
    %78 = math.log %68 : vector<4x512xf32>
    %cst_15 = arith.constant -2.000000e+00 : f32
    %79 = vector.broadcast %cst_15 : f32 to vector<4x512xf32>
    %80 = arith.mulf %79, %78 : vector<4x512xf32>
    %81 = math.sqrt %80 : vector<4x512xf32>
    %cst_16 = arith.constant 6.28318548 : f32
    %82 = vector.broadcast %cst_16 : f32 to vector<4x512xf32>
    %83 = arith.mulf %82, %77 : vector<4x512xf32>
    %84 = math.cos %83 : vector<4x512xf32>
    %85 = arith.mulf %81, %84 : vector<4x512xf32>
    %c0_17 = arith.constant 0 : index
    %c0_18 = arith.constant 0 : index
    %86 = vector.load %arg2[%c0_17, %c0_18] : memref<4x512xf32, #tpu.memory_space<vmem>>, vector<4x512xf32>
    %cst_19 = arith.constant 1.000000e-01 : f32
    %87 = vector.broadcast %cst_19 : f32 to vector<4x512xf32>
    %88 = arith.mulf %87, %85 : vector<4x512xf32>
    %89 = arith.addf %86, %88 : vector<4x512xf32>
    %c0_20 = arith.constant 0 : index
    %c0_21 = arith.constant 0 : index
    %90 = vector.load %arg3[%c0_20, %c0_21] : memref<4x512xf32, #tpu.memory_space<vmem>>, vector<4x512xf32>
    tpu.vector_store %arg3[%c0_20, %c0_21], %89 {strides = array<i32>} : memref<4x512xf32, #tpu.memory_space<vmem>>, vector<4x512xf32>,
    return
  }
  func.func @transform_0(%arg0: i32, %arg1: memref<1xi32, #tpu.memory_space<smem>>) -> (i32, i32) {
    %c0_i32 = arith.constant 0 : i32
    %c0_i32_0 = arith.constant 0 : i32
    return %arg0, %c0_i32 : i32, i32
  }
  func.func @transform_1(%arg0: i32, %arg1: memref<1xi32, #tpu.memory_space<smem>>) -> (i32, i32) {
    %c0_i32 = arith.constant 0 : i32
    %c0_i32_0 = arith.constant 0 : i32
    return %arg0, %c0_i32 : i32, i32
  }
}

</mosaic_0001>

<llo_original>
// kernel: tpu_custom_call.1
$region0: #{tpu_custom_call.1}
  #allocation0 [shape = 'u32[]', space=smem, size = 0x4, offset = 0x4, fixed_abs, tag = 'smem constant byte address 0x4 - core index']
  #allocation1 [shape = 'u32[144,128]{1,0:T(1,128)}', space=vmem, size = 0x12000, scoped, tag = 'internal scratch']
  #allocation2 [shape = 's32[1]{0}', space=sflag, size = 0x4, scoped, tag = 'scoped memory for tpu_custom_call.1']
  #allocation3 [shape = 's32[1]{0:T(128)S(6)}', space=smem, size = 0x200, scoped, tag = 'prefetched SMEM operand 0']
  %s0 = inlined_call_operand.<no memory space> [shape: s32[1], index: 0, kind: input, shape index: {}]
  %s1 = inlined_call_operand.hbm [shape: f32[4,512], index: 1, kind: input, shape index: {}, may-alias: {1,2}]
  %s2 = inlined_call_operand.hbm [shape: f32[4,512], index: 2, kind: output, shape index: {}, may-alias: {1,2}]
  %s3 = sld [smem:[#allocation0]]
  $region18: #{tpu_custom_call.1} parent=0
    _
  %s5 = ssub.s32 1, %s3
  %s6 = scalar_select 0, %s5, %s3
  %7 = sst [smem:[#allocation3]] %s0
  $region1: #{tpu_custom_call.1} parent=0
    #allocation4 [shape = 'u8[8192]{0}', space=vmem, size = 0x2000, scoped, tag = 'input window, operand 1, single buffered']
    #allocation5 [shape = 's32[1]{0}', space=sflag, size = 0x4, scoped, tag = 'scoped memory for tpu_custom_call.1']
    #allocation6 [shape = 's32[1]{0}', space=sflag, size = 0x4, scoped, tag = 'scoped memory for tpu_custom_call.1']
    #allocation7 [shape = 'u8[8192]{0}', space=vmem, size = 0x2000, scoped, tag = 'output window, operand 0, single buffered']
    %8 = vsyncpa [#allocation5], 0
    %9 = vsyncpa [#allocation6], 0
    // Predicated region
    $region2: #{tpu_custom_call.1} parent=1 // pred_check
      _
    $region3: #{tpu_custom_call.1} parent=1 // pred_check_branch
      %11 = sbr.rel (0) target = $region5
    $region4: #{tpu_custom_call.1} parent=1 // pred_region
      %s13 = ssub.s32 256, 256
      %14 = vsyncadd [#allocation5], %s13
      %s16 = sshll.u32 [#allocation4], 4
      %s17 = int_to_ptr.vmem [resolvable:$true] %s16
      %19 = dma.hbm_to_vmem [thread:$0]  %s1, 256, %s17, [#allocation5]
    $region5: #{tpu_custom_call.1} parent=1 // pred_fallthru
      _
    // Predicated region
    $region6: #{tpu_custom_call.1} parent=1 // pred_check
      _
    $region7: #{tpu_custom_call.1} parent=1 // pred_check_branch
      %21 = sbr.rel (0) target = $region9
    $region8: #{tpu_custom_call.1} parent=1 // pred_region
      %22 = dma.done [#allocation5], 256
    $region9: #{tpu_custom_call.1} parent=1 // pred_fallthru
      _
    %s23 = sld [smem:[#allocation3]]
    %v24 = vlaneseq
    %v25 = vshrl.u32 %v24, 7
    %v26 = vlaneseq
    %v27 = vand.u32 %v26, 127
    %v28 = vadd.s32 %v27, 128
    %v29 = vadd.s32 %v27, 256
    %v30 = vadd.s32 %v27, 384
    %s31 = smul.u32 0, 4
    %v32 = vstv %s31
    %v33 = vadd.s32 %v32, %v25
    %v34 = vmul.u32 %v33, 512
    %v35 = vadd.s32 %v34, %v27
    %v36 = vadd.s32 %v34, %v28
    %v37 = vadd.s32 %v34, %v29
    %v38 = vadd.s32 %v34, %v30
    %v39 = vmul.u32 %v35, 2654435761
    %v40 = vmul.u32 %v36, 2654435761
    %v41 = vmul.u32 %v37, 2654435761
    %v42 = vmul.u32 %v38, 2654435761
    %v43 = vstv %s23
    %v44 = vadd.s32 %v39, %v43
    %v45 = vadd.s32 %v40, %v43
    %v46 = vadd.s32 %v41, %v43
    %v47 = vadd.s32 %v42, %v43
    %v48 = vshra.s32 %v44, 16
    %v49 = vshra.s32 %v45, 16
    %v50 = vshra.s32 %v46, 16
    %v51 = vshra.s32 %v47, 16
    %v52 = vand.u32 %v48, 65535
    %v53 = vand.u32 %v49, 65535
    %v54 = vand.u32 %v50, 65535
    %v55 = vand.u32 %v51, 65535
    %v56 = vxor.u32 %v44, %v52
    %v57 = vxor.u32 %v45, %v53
    %v58 = vxor.u32 %v46, %v54
    %v59 = vxor.u32 %v47, %v55
    %v60 = vmul.u32 %v56, 2146121005
    %v61 = vmul.u32 %v57, 2146121005
    %v62 = vmul.u32 %v58, 2146121005
    %v63 = vmul.u32 %v59, 2146121005
    %v64 = vshra.s32 %v60, 15
    %v65 = vshra.s32 %v61, 15
    %v66 = vshra.s32 %v62, 15
    %v67 = vshra.s32 %v63, 15
    %v68 = vand.u32 %v64, 131071
    %v69 = vand.u32 %v65, 131071
    %v70 = vand.u32 %v66, 131071
    %v71 = vand.u32 %v67, 131071
    %v72 = vxor.u32 %v60, %v68
    %v73 = vxor.u32 %v61, %v69
    %v74 = vxor.u32 %v62, %v70
    %v75 = vxor.u32 %v63, %v71
    %v76 = vmul.u32 %v72, 2221713035
    %v77 = vmul.u32 %v73, 2221713035
    %v78 = vmul.u32 %v74, 2221713035
    %v79 = vmul.u32 %v75, 2221713035
    %v80 = vshra.s32 %v76, 16
    %v81 = vshra.s32 %v77, 16
    %v82 = vshra.s32 %v78, 16
    %v83 = vshra.s32 %v79, 16
    %v84 = vand.u32 %v80, 65535
    %v85 = vand.u32 %v81, 65535
    %v86 = vand.u32 %v82, 65535
    %v87 = vand.u32 %v83, 65535
    %v88 = vxor.u32 %v76, %v84
    %v89 = vxor.u32 %v77, %v85
    %v90 = vxor.u32 %v78, %v86
    %v91 = vxor.u32 %v79, %v87
    %v92 = vxor.u32 %v35, 843314857
    %v93 = vxor.u32 %v36, 843314857
    %v94 = vxor.u32 %v37, 843314857
    %v95 = vxor.u32 %v38, 843314857
    %v96 = vmul.u32 %v92, 3266489917
    %v97 = vmul.u32 %v93, 3266489917
    %v98 = vmul.u32 %v94, 3266489917
    %v99 = vmul.u32 %v95, 3266489917
    %s100 = smul.u32 %s23, 668265263
    %v101 = vstv %s100
    %v102 = vadd.s32 %v96, %v101
    %v103 = vadd.s32 %v97, %v101
    %v104 = vadd.s32 %v98, %v101
    %v105 = vadd.s32 %v99, %v101
    %v106 = vadd.s32 %v102, 374761393
    %v107 = vadd.s32 %v103, 374761393
    %v108 = vadd.s32 %v104, 374761393
    %v109 = vadd.s32 %v105, 374761393
    %v110 = vshra.s32 %v106, 16
    %v111 = vshra.s32 %v107, 16
    %v112 = vshra.s32 %v108, 16
    %v113 = vshra.s32 %v109, 16
    %v114 = vand.u32 %v110, 65535
    %v115 = vand.u32 %v111, 65535
    %v116 = vand.u32 %v112, 65535
    %v117 = vand.u32 %v113, 65535
    %v118 = vxor.u32 %v106, %v114
    %v119 = vxor.u32 %v107, %v115
    %v120 = vxor.u32 %v108, %v116
    %v121 = vxor.u32 %v109, %v117
    %v122 = vmul.u32 %v118, 2146121005
    %v123 = vmul.u32 %v119, 2146121005
    %v124 = vmul.u32 %v120, 2146121005
    %v125 = vmul.u32 %v121, 2146121005
    %v126 = vshra.s32 %v122, 15
    %v127 = vshra.s32 %v123, 15
    %v128 = vshra.s32 %v124, 15
    %v129 = vshra.s32 %v125, 15
    %v130 = vand.u32 %v126, 131071
    %v131 = vand.u32 %v127, 131071
    %v132 = vand.u32 %v128, 131071
    %v133 = vand.u32 %v129, 131071
    %v134 = vxor.u32 %v122, %v130
    %v135 = vxor.u32 %v123, %v131
    %v136 = vxor.u32 %v124, %v132
    %v137 = vxor.u32 %v125, %v133
    %v138 = vmul.u32 %v134, 2221713035
    %v139 = vmul.u32 %v135, 2221713035
    %v140 = vmul.u32 %v136, 2221713035
    %v141 = vmul.u32 %v137, 2221713035
    %v142 = vshra.s32 %v138, 16
    %v143 = vshra.s32 %v139, 16
    %v144 = vshra.s32 %v140, 16
    %v145 = vshra.s32 %v141, 16
    %v146 = vand.u32 %v142, 65535
    %v147 = vand.u32 %v143, 65535
    %v148 = vand.u32 %v144, 65535
    %v149 = vand.u32 %v145, 65535
    %v150 = vxor.u32 %v138, %v146
    %v151 = vxor.u32 %v139, %v147
    %v152 = vxor.u32 %v140, %v148
    %v153 = vxor.u32 %v141, %v149
    %v154 = vshra.s32 %v88, 8
    %v155 = vshra.s32 %v89, 8
    %v156 = vshra.s32 %v90, 8
    %v157 = vshra.s32 %v91, 8
    %v158 = vand.u32 %v154, 16777215
    %v159 = vand.u32 %v155, 16777215
    %v160 = vand.u32 %v156, 16777215
    %v161 = vand.u32 %v157, 16777215
    %v162 = vcvt.s32.f32 %v158
    %v163 = vcvt.s32.f32 %v159
    %v164 = vcvt.s32.f32 %v160
    %v165 = vcvt.s32.f32 %v161
    %v166 = vadd.f32 %v162, 0.5
    %v167 = vadd.f32 %v163, 0.5
    %v168 = vadd.f32 %v164, 0.5
    %v169 = vadd.f32 %v165, 0.5
    %v170 = vmul.f32 %v166, 5.9604645e-08
    %v171 = vmul.f32 %v167, 5.9604645e-08
    %v172 = vmul.f32 %v168, 5.9604645e-08
    %v173 = vmul.f32 %v169, 5.9604645e-08
    %v174 = vshra.s32 %v150, 8
    %v175 = vshra.s32 %v151, 8
    %v176 = vshra.s32 %v152, 8
    %v177 = vshra.s32 %v153, 8
    %v178 = vand.u32 %v174, 16777215
    %v179 = vand.u32 %v175, 16777215
    %v180 = vand.u32 %v176, 16777215
    %v181 = vand.u32 %v177, 16777215
    %v182 = vcvt.s32.f32 %v178
    %v183 = vcvt.s32.f32 %v179
    %v184 = vcvt.s32.f32 %v180
    %v185 = vcvt.s32.f32 %v181
    %v186 = vadd.f32 %v182, 0.5
    %v187 = vadd.f32 %v183, 0.5
    %v188 = vadd.f32 %v184, 0.5
    %v189 = vadd.f32 %v185, 0.5
    %v190 = vmul.f32 %v186, 5.9604645e-08
    %v191 = vmul.f32 %v187, 5.9604645e-08
    %v192 = vmul.f32 %v188, 5.9604645e-08
    %v193 = vmul.f32 %v189, 5.9604645e-08
    %v194 = vlog2.pop %v170
    %v195 = vmul.f32 %v194, 0.6931472
    %v196 = vlog2.pop %v171
    %v197 = vmul.f32 %v196, 0.6931472
    %v198 = vlog2.pop %v172
    %v199 = vmul.f32 %v198, 0.6931472
    %v200 = vlog2.pop %v173
    %v201 = vmul.f32 %v200, 0.6931472
    %v202 = vmul.f32 %v195, -2.0
    %v203 = vmul.f32 %v197, -2.0
    %v204 = vmul.f32 %v199, -2.0
    %v205 = vmul.f32 %v201, -2.0
    %v206 = vrsqrt.pop %v202
    %v207 = vmul.f32 %v202, %v206
    %vm208 = vcmp.eq.f32.partialorder %v202, inf
    %v209 = vsel %vm208, %v202, %v207
    %vm210 = vcmp.eq.f32.partialorder %v202, 0.0
    %v211 = vand.u32 %v202, 2147483648
    %v212 = vsel %vm210, %v211, %v209
    %v213 = vrsqrt.pop %v203
    %v214 = vmul.f32 %v203, %v213
    %vm215 = vcmp.eq.f32.partialorder %v203, inf
    %v216 = vsel %vm215, %v203, %v214
    %vm217 = vcmp.eq.f32.partialorder %v203, 0.0
    %v218 = vand.u32 %v203, 2147483648
    %v219 = vsel %vm217, %v218, %v216
    %v220 = vrsqrt.pop %v204
    %v221 = vmul.f32 %v204, %v220
    %vm222 = vcmp.eq.f32.partialorder %v204, inf
    %v223 = vsel %vm222, %v204, %v221
    %vm224 = vcmp.eq.f32.partialorder %v204, 0.0
    %v225 = vand.u32 %v204, 2147483648
    %v226 = vsel %vm224, %v225, %v223
    %v227 = vrsqrt.pop %v205
    %v228 = vmul.f32 %v205, %v227
    %vm229 = vcmp.eq.f32.partialorder %v205, inf
    %v230 = vsel %vm229, %v205, %v228
    %vm231 = vcmp.eq.f32.partialorder %v205, 0.0
    %v232 = vand.u32 %v205, 2147483648
    %v233 = vsel %vm231, %v232, %v230
    %v234 = vmul.f32 %v190, 6.2831855
    %v235 = vmul.f32 %v191, 6.2831855
    %v236 = vmul.f32 %v192, 6.2831855
    %v237 = vmul.f32 %v193, 6.2831855
    %v238 = vand.u32 2147483647, %v234
    %vm239 = vcmp.le.f32.partialorder %v238, 0.7853982
    %vm240 = vcmp.lt.s32.totalorder %v234, 0
    %v241 = vand.u32 %v234, 2139095040
    %v242 = vshrl.u32 %v241, 23
    %v243 = vsub.s32 %v242, 127
    %v244 = vand.u32 2147483647, %v234
    %v245 = vand.u32 %v244, 8388607
    %v246 = vor.u32 %v245, 8388608
    %v247 = vsub.s32 0, %v246
    %v248 = vadd.s32 %v243, 1
    %vm249 = vcmp.gt.s32.totalorder %v248, 0
    %v250 = vsel %vm249, %v248, 0
    %v251 = vshrl.u32 %v250, 5
    %v252 = vand.u32 %v250, 31
    %v253 = vsub.s32 32, %v252
    %v254 = vshrl.u32 683565275, %v253
    %v255 = vshll.u32 683565275, %v252
    %v256 = vshrl.u32 2475754826, %v253
    %v257 = vor.u32 %v255, %v256
    %v258 = vshll.u32 2475754826, %v252
    %v259 = vshrl.u32 2131351028, %v253
    %v260 = vor.u32 %v258, %v259
    %v261 = vshll.u32 2131351028, %v252
    %v262 = vshrl.u32 2102212464, %v253
    %v263 = vor.u32 %v261, %v262
    %v264 = vshll.u32 2102212464, %v252
    %v265 = vshrl.u32 920167782, %v253
    %v266 = vor.u32 %v264, %v265
    %v267 = vshll.u32 920167782, %v252
    %v268 = vshrl.u32 1326507024, %v253
    %v269 = vor.u32 %v267, %v268
    %vm270 = vcmp.lt.s32.totalorder %v251, 1
    %vm271 = vcmp.lt.s32.totalorder %v251, 2
    %vm272 = vcmp.lt.s32.totalorder %v251, 3
    %vm273 = vcmp.lt.s32.totalorder %v251, 4
    %v274 = vsel %vm270, %v254, %v257
    %v275 = vsel %vm273, %v263, 2102212464
    %v276 = vsel %vm272, %v260, %v275
    %v277 = vsel %vm271, %v274, %v276
    %v278 = vsel %vm270, %v257, %v260
    %v279 = vsel %vm273, %v266, 920167782
    %v280 = vsel %vm272, %v263, %v279
    %v281 = vsel %vm271, %v278, %v280
    %v282 = vsel %vm270, %v260, %v263
    %v283 = vsel %vm273, %v269, 1326507024
    %v284 = vsel %vm272, %v266, %v283
    %v285 = vsel %vm271, %v282, %v284
    %v286 = vshll.u32 %v246, 8
    %v287 = vmul.u32.u64.compose %v286, %v285
    %v288 = vextract.low.u32 %v287
    %v289 = vextract.high.u32 %v287
    %v290 = vmul.u32.u64.compose %v286, %v281
    %v291 = vextract.low.u32 %v290
    %v292 = vextract.high.u32 %v290
    %v293 = vmul.u32 %v286, %v277
    %v294 = vadd.s32 %v289, %v291
    %vm295 = vc.u32 %v289, %v291
    %v296 = vadd.s32 %v292, 1
    %v297 = vsel %vm295, %v296, %v292
    %v298 = vadd.s32 %v293, %v297
    %v299 = vadd.s32 %v298, 536870912
    %v300 = vshrl.u32 %v299, 30
    %v301 = vshll.u32 %v300, 30
    %v302 = vsub.s32 %v298, %v301
    %vm303 = vcmp.lt.s32.totalorder %v302, 0
    %v304 = vsub.s32 0, %v302
    %v305 = vsel %vm303, %v304, %v302
    %v306 = vclz %v305
    %v307 = vsub.s32 %v306, 2
    %vm308 = vcmp.gt.s32.totalorder 0, %v307
    %v309 = vsel %vm308, 0, %v307
    %v310 = vsub.s32 32, %v309
    %v311 = vshll.u32 %v302, %v309
    %v312 = vshrl.u32 %v294, %v310
    %v313 = vor.u32 %v311, %v312
    %v314 = vsub.s32 4294967266, %v309
    %v315 = vadd.s32 %v314, 127
    %v316 = vshll.u32 %v315, 23
    %v317 = vor.u32 4788187, %v316
    %v318 = vand.u32 2147483647, %v317
    %v320 = vcvt.s32.f32 %v313
    %v321 = vmul.f32 %v320, %v318
    %v322 = vxor.u32 %v321, 2147483648
    %v323 = vsel %vm240, %v322, %v321
    %v324 = vsub.s32 4, %v300
    %v325 = vsel %vm240, %v324, %v300
    %v326 = vsel %vm239, %v234, %v323
    %v327 = vsel %vm239, 0, %v325
    %v328 = vcosq.f32.pop %v326
    %v329 = vsinq.f32.pop %v326
    %vm330 = vweird.f32 %v234
    %v331 = vand.u32 %v327, 3
    %vm332 = vcmp.lt.s32.totalorder %v331, 2
    %vm333 = vcmp.eq.s32.totalorder %v331, 0
    %v334 = vxor.u32 %v329, 2147483648
    %v335 = vsel %vm333, %v328, %v334
    %vm336 = vcmp.eq.s32.totalorder %v331, 2
    %v337 = vxor.u32 %v328, 2147483648
    %v338 = vsel %vm336, %v337, %v329
    %v339 = vsel %vm332, %v335, %v338
    %v340 = vsel %vm330, nan, %v339
    %v341 = vand.u32 2147483647, %v235
    %vm342 = vcmp.le.f32.partialorder %v341, 0.7853982
    %vm343 = vcmp.lt.s32.totalorder %v235, 0
    %v344 = vand.u32 %v235, 2139095040
    %v345 = vshrl.u32 %v344, 23
    %v346 = vsub.s32 %v345, 127
    %v347 = vand.u32 2147483647, %v235
    %v348 = vand.u32 %v347, 8388607
    %v349 = vor.u32 %v348, 8388608
    %v350 = vsub.s32 0, %v349
    %v351 = vadd.s32 %v346, 1
    %vm352 = vcmp.gt.s32.totalorder %v351, 0
    %v353 = vsel %vm352, %v351, 0
    %v354 = vshrl.u32 %v353, 5
    %v355 = vand.u32 %v353, 31
    %v356 = vsub.s32 32, %v355
    %v357 = vshrl.u32 683565275, %v356
    %v358 = vshll.u32 683565275, %v355
    %v359 = vshrl.u32 2475754826, %v356
    %v360 = vor.u32 %v358, %v359
    %v361 = vshll.u32 2475754826, %v355
    %v362 = vshrl.u32 2131351028, %v356
    %v363 = vor.u32 %v361, %v362
    %v364 = vshll.u32 2131351028, %v355
    %v365 = vshrl.u32 2102212464, %v356
    %v366 = vor.u32 %v364, %v365
    %v367 = vshll.u32 2102212464, %v355
    %v368 = vshrl.u32 920167782, %v356
    %v369 = vor.u32 %v367, %v368
    %v370 = vshll.u32 920167782, %v355
    %v371 = vshrl.u32 1326507024, %v356
    %v372 = vor.u32 %v370, %v371
    %vm373 = vcmp.lt.s32.totalorder %v354, 1
    %vm374 = vcmp.lt.s32.totalorder %v354, 2
    %vm375 = vcmp.lt.s32.totalorder %v354, 3
    %vm376 = vcmp.lt.s32.totalorder %v354, 4
    %v377 = vsel %vm373, %v357, %v360
    %v378 = vsel %vm376, %v366, 2102212464
    %v379 = vsel %vm375, %v363, %v378
    %v380 = vsel %vm374, %v377, %v379
    %v381 = vsel %vm373, %v360, %v363
    %v382 = vsel %vm376, %v369, 920167782
    %v383 = vsel %vm375, %v366, %v382
    %v384 = vsel %vm374, %v381, %v383
    %v385 = vsel %vm373, %v363, %v366
    %v386 = vsel %vm376, %v372, 1326507024
    %v387 = vsel %vm375, %v369, %v386
    %v388 = vsel %vm374, %v385, %v387
    %v389 = vshll.u32 %v349, 8
    %v390 = vmul.u32.u64.compose %v389, %v388
    %v391 = vextract.low.u32 %v390
    %v392 = vextract.high.u32 %v390
    %v393 = vmul.u32.u64.compose %v389, %v384
    %v394 = vextract.low.u32 %v393
    %v395 = vextract.high.u32 %v393
    %v396 = vmul.u32 %v389, %v380
    %v397 = vadd.s32 %v392, %v394
    %vm398 = vc.u32 %v392, %v394
    %v399 = vadd.s32 %v395, 1
    %v400 = vsel %vm398, %v399, %v395
    %v401 = vadd.s32 %v396, %v400
    %v402 = vadd.s32 %v401, 536870912
    %v403 = vshrl.u32 %v402, 30
    %v404 = vshll.u32 %v403, 30
    %v405 = vsub.s32 %v401, %v404
    %vm406 = vcmp.lt.s32.totalorder %v405, 0
    %v407 = vsub.s32 0, %v405
    %v408 = vsel %vm406, %v407, %v405
    %v409 = vclz %v408
    %v410 = vsub.s32 %v409, 2
    %vm411 = vcmp.gt.s32.totalorder 0, %v410
    %v412 = vsel %vm411, 0, %v410
    %v413 = vsub.s32 32, %v412
    %v414 = vshll.u32 %v405, %v412
    %v415 = vshrl.u32 %v397, %v413
    %v416 = vor.u32 %v414, %v415
    %v417 = vsub.s32 4294967266, %v412
    %v418 = vadd.s32 %v417, 127
    %v419 = vshll.u32 %v418, 23
    %v420 = vor.u32 4788187, %v419
    %v421 = vand.u32 2147483647, %v420
    %v423 = vcvt.s32.f32 %v416
    %v424 = vmul.f32 %v423, %v421
    %v425 = vxor.u32 %v424, 2147483648
    %v426 = vsel %vm343, %v425, %v424
    %v427 = vsub.s32 4, %v403
    %v428 = vsel %vm343, %v427, %v403
    %v429 = vsel %vm342, %v235, %v426
    %v430 = vsel %vm342, 0, %v428
    %v431 = vcosq.f32.pop %v429
    %v432 = vsinq.f32.pop %v429
    %vm433 = vweird.f32 %v235
    %v434 = vand.u32 %v430, 3
    %vm435 = vcmp.lt.s32.totalorder %v434, 2
    %vm436 = vcmp.eq.s32.totalorder %v434, 0
    %v437 = vxor.u32 %v432, 2147483648
    %v438 = vsel %vm436, %v431, %v437
    %vm439 = vcmp.eq.s32.totalorder %v434, 2
    %v440 = vxor.u32 %v431, 2147483648
    %v441 = vsel %vm439, %v440, %v432
    %v442 = vsel %vm435, %v438, %v441
    %v443 = vsel %vm433, nan, %v442
    %v444 = vand.u32 2147483647, %v236
    %vm445 = vcmp.le.f32.partialorder %v444, 0.7853982
    %vm446 = vcmp.lt.s32.totalorder %v236, 0
    %v447 = vand.u32 %v236, 2139095040
    %v448 = vshrl.u32 %v447, 23
    %v449 = vsub.s32 %v448, 127
    %v450 = vand.u32 2147483647, %v236
    %v451 = vand.u32 %v450, 8388607
    %v452 = vor.u32 %v451, 8388608
    %v453 = vsub.s32 0, %v452
    %v454 = vadd.s32 %v449, 1
    %vm455 = vcmp.gt.s32.totalorder %v454, 0
    %v456 = vsel %vm455, %v454, 0
    %v457 = vshrl.u32 %v456, 5
    %v458 = vand.u32 %v456, 31
    %v459 = vsub.s32 32, %v458
    %v460 = vshrl.u32 683565275, %v459
    %v461 = vshll.u32 683565275, %v458
    %v462 = vshrl.u32 2475754826, %v459
    %v463 = vor.u32 %v461, %v462
    %v464 = vshll.u32 2475754826, %v458
    %v465 = vshrl.u32 2131351028, %v459
    %v466 = vor.u32 %v464, %v465
    %v467 = vshll.u32 2131351028, %v458
    %v468 = vshrl.u32 2102212464, %v459
    %v469 = vor.u32 %v467, %v468
    %v470 = vshll.u32 2102212464, %v458
    %v471 = vshrl.u32 920167782, %v459
    %v472 = vor.u32 %v470, %v471
    %v473 = vshll.u32 920167782, %v458
    %v474 = vshrl.u32 1326507024, %v459
    %v475 = vor.u32 %v473, %v474
    %vm476 = vcmp.lt.s32.totalorder %v457, 1
    %vm477 = vcmp.lt.s32.totalorder %v457, 2
    %vm478 = vcmp.lt.s32.totalorder %v457, 3
    %vm479 = vcmp.lt.s32.totalorder %v457, 4
    %v480 = vsel %vm476, %v460, %v463
    %v481 = vsel %vm479, %v469, 2102212464
    %v482 = vsel %vm478, %v466, %v481
    %v483 = vsel %vm477, %v480, %v482
    %v484 = vsel %vm476, %v463, %v466
    %v485 = vsel %vm479, %v472, 920167782
    %v486 = vsel %vm478, %v469, %v485
    %v487 = vsel %vm477, %v484, %v486
    %v488 = vsel %vm476, %v466, %v469
    %v489 = vsel %vm479, %v475, 1326507024
    %v490 = vsel %vm478, %v472, %v489
    %v491 = vsel %vm477, %v488, %v490
    %v492 = vshll.u32 %v452, 8
    %v493 = vmul.u32.u64.compose %v492, %v491
    %v494 = vextract.low.u32 %v493
    %v495 = vextract.high.u32 %v493
    %v496 = vmul.u32.u64.compose %v492, %v487
    %v497 = vextract.low.u32 %v496
    %v498 = vextract.high.u32 %v496
    %v499 = vmul.u32 %v492, %v483
    %v500 = vadd.s32 %v495, %v497
    %vm501 = vc.u32 %v495, %v497
    %v502 = vadd.s32 %v498, 1
    %v503 = vsel %vm501, %v502, %v498
    %v504 = vadd.s32 %v499, %v503
    %v505 = vadd.s32 %v504, 536870912
    %v506 = vshrl.u32 %v505, 30
    %v507 = vshll.u32 %v506, 30
    %v508 = vsub.s32 %v504, %v507
    %vm509 = vcmp.lt.s32.totalorder %v508, 0
    %v510 = vsub.s32 0, %v508
    %v511 = vsel %vm509, %v510, %v508
    %v512 = vclz %v511
    %v513 = vsub.s32 %v512, 2
    %vm514 = vcmp.gt.s32.totalorder 0, %v513
    %v515 = vsel %vm514, 0, %v513
    %v516 = vsub.s32 32, %v515
    %v517 = vshll.u32 %v508, %v515
    %v518 = vshrl.u32 %v500, %v516
    %v519 = vor.u32 %v517, %v518
    %v520 = vsub.s32 4294967266, %v515
    %v521 = vadd.s32 %v520, 127
    %v522 = vshll.u32 %v521, 23
    %v523 = vor.u32 4788187, %v522
    %v524 = vand.u32 2147483647, %v523
    %v526 = vcvt.s32.f32 %v519
    %v527 = vmul.f32 %v526, %v524
    %v528 = vxor.u32 %v527, 2147483648
    %v529 = vsel %vm446, %v528, %v527
    %v530 = vsub.s32 4, %v506
    %v531 = vsel %vm446, %v530, %v506
    %v532 = vsel %vm445, %v236, %v529
    %v533 = vsel %vm445, 0, %v531
    %v534 = vcosq.f32.pop %v532
    %v535 = vsinq.f32.pop %v532
    %vm536 = vweird.f32 %v236
    %v537 = vand.u32 %v533, 3
    %vm538 = vcmp.lt.s32.totalorder %v537, 2
    %vm539 = vcmp.eq.s32.totalorder %v537, 0
    %v540 = vxor.u32 %v535, 2147483648
    %v541 = vsel %vm539, %v534, %v540
    %vm542 = vcmp.eq.s32.totalorder %v537, 2
    %v543 = vxor.u32 %v534, 2147483648
    %v544 = vsel %vm542, %v543, %v535
    %v545 = vsel %vm538, %v541, %v544
    %v546 = vsel %vm536, nan, %v545
    %v547 = vand.u32 2147483647, %v237
    %vm548 = vcmp.le.f32.partialorder %v547, 0.7853982
    %vm549 = vcmp.lt.s32.totalorder %v237, 0
    %v550 = vand.u32 %v237, 2139095040
    %v551 = vshrl.u32 %v550, 23
    %v552 = vsub.s32 %v551, 127
    %v553 = vand.u32 2147483647, %v237
    %v554 = vand.u32 %v553, 8388607
    %v555 = vor.u32 %v554, 8388608
    %v556 = vsub.s32 0, %v555
    %v557 = vadd.s32 %v552, 1
    %vm558 = vcmp.gt.s32.totalorder %v557, 0
    %v559 = vsel %vm558, %v557, 0
    %v560 = vshrl.u32 %v559, 5
    %v561 = vand.u32 %v559, 31
    %v562 = vsub.s32 32, %v561
    %v563 = vshrl.u32 683565275, %v562
    %v564 = vshll.u32 683565275, %v561
    %v565 = vshrl.u32 2475754826, %v562
    %v566 = vor.u32 %v564, %v565
    %v567 = vshll.u32 2475754826, %v561
    %v568 = vshrl.u32 2131351028, %v562
    %v569 = vor.u32 %v567, %v568
    %v570 = vshll.u32 2131351028, %v561
    %v571 = vshrl.u32 2102212464, %v562
    %v572 = vor.u32 %v570, %v571
    %v573 = vshll.u32 2102212464, %v561
    %v574 = vshrl.u32 920167782, %v562
    %v575 = vor.u32 %v573, %v574
    %v576 = vshll.u32 920167782, %v561
    %v577 = vshrl.u32 1326507024, %v562
    %v578 = vor.u32 %v576, %v577
    %vm579 = vcmp.lt.s32.totalorder %v560, 1
    %vm580 = vcmp.lt.s32.totalorder %v560, 2
    %vm581 = vcmp.lt.s32.totalorder %v560, 3
    %vm582 = vcmp.lt.s32.totalorder %v560, 4
    %v583 = vsel %vm579, %v563, %v566
    %v584 = vsel %vm582, %v572, 2102212464
    %v585 = vsel %vm581, %v569, %v584
    %v586 = vsel %vm580, %v583, %v585
    %v587 = vsel %vm579, %v566, %v569
    %v588 = vsel %vm582, %v575, 920167782
    %v589 = vsel %vm581, %v572, %v588
    %v590 = vsel %vm580, %v587, %v589
    %v591 = vsel %vm579, %v569, %v572
    %v592 = vsel %vm582, %v578, 1326507024
    %v593 = vsel %vm581, %v575, %v592
    %v594 = vsel %vm580, %v591, %v593
    %v595 = vshll.u32 %v555, 8
    %v596 = vmul.u32.u64.compose %v595, %v594
    %v597 = vextract.low.u32 %v596
    %v598 = vextract.high.u32 %v596
    %v599 = vmul.u32.u64.compose %v595, %v590
    %v600 = vextract.low.u32 %v599
    %v601 = vextract.high.u32 %v599
    %v602 = vmul.u32 %v595, %v586
    %v603 = vadd.s32 %v598, %v600
    %vm604 = vc.u32 %v598, %v600
    %v605 = vadd.s32 %v601, 1
    %v606 = vsel %vm604, %v605, %v601
    %v607 = vadd.s32 %v602, %v606
    %v608 = vadd.s32 %v607, 536870912
    %v609 = vshrl.u32 %v608, 30
    %v610 = vshll.u32 %v609, 30
    %v611 = vsub.s32 %v607, %v610
    %vm612 = vcmp.lt.s32.totalorder %v611, 0
    %v613 = vsub.s32 0, %v611
    %v614 = vsel %vm612, %v613, %v611
    %v615 = vclz %v614
    %v616 = vsub.s32 %v615, 2
    %vm617 = vcmp.gt.s32.totalorder 0, %v616
    %v618 = vsel %vm617, 0, %v616
    %v619 = vsub.s32 32, %v618
    %v620 = vshll.u32 %v611, %v618
    %v621 = vshrl.u32 %v603, %v619
    %v622 = vor.u32 %v620, %v621
    %v623 = vsub.s32 4294967266, %v618
    %v624 = vadd.s32 %v623, 127
    %v625 = vshll.u32 %v624, 23
    %v626 = vor.u32 4788187, %v625
    %v627 = vand.u32 2147483647, %v626
    %v629 = vcvt.s32.f32 %v622
    %v630 = vmul.f32 %v629, %v627
    %v631 = vxor.u32 %v630, 2147483648
    %v632 = vsel %vm549, %v631, %v630
    %v633 = vsub.s32 4, %v609
    %v634 = vsel %vm549, %v633, %v609
    %v635 = vsel %vm548, %v237, %v632
    %v636 = vsel %vm548, 0, %v634
    %v637 = vcosq.f32.pop %v635
    %v638 = vsinq.f32.pop %v635
    %vm639 = vweird.f32 %v237
    %v640 = vand.u32 %v636, 3
    %vm641 = vcmp.lt.s32.totalorder %v640, 2
    %vm642 = vcmp.eq.s32.totalorder %v640, 0
    %v643 = vxor.u32 %v638, 2147483648
    %v644 = vsel %vm642, %v637, %v643
    %vm645 = vcmp.eq.s32.totalorder %v640, 2
    %v646 = vxor.u32 %v637, 2147483648
    %v647 = vsel %vm645, %v646, %v638
    %v648 = vsel %vm641, %v644, %v647
    %v649 = vsel %vm639, nan, %v648
    %v650 = vmul.f32 %v212, %v340
    %v651 = vmul.f32 %v219, %v443
    %v652 = vmul.f32 %v226, %v546
    %v653 = vmul.f32 %v233, %v649
    %v654 = vld [vmem:[#allocation4] sm:$0xff]
    %v655 = vld [vmem:[#allocation4 + $0x8] sm:$0xff]
    %v656 = vmul.f32 %v650, 0.1
    %v657 = vmul.f32 %v651, 0.1
    %v658 = vmul.f32 %v652, 0.1
    %v659 = vmul.f32 %v653, 0.1
    %v664 = vcombine.low %v656, %v657
    %v665 = vcombine.low %v658, %v659
    %v668 = vadd.f32 %v654, %v664
    %v669 = vadd.f32 %v655, %v665
    %670 = vst [vmem:[#allocation7] sm:$0xff] %v668
    %671 = vst [vmem:[#allocation7 + $0x8] sm:$0xff] %v669
    // Predicated region
    $region10: #{tpu_custom_call.1} parent=1 // pred_check
      _
    $region11: #{tpu_custom_call.1} parent=1 // pred_check_branch
      %673 = sbr.rel (0) target = $region13
    $region12: #{tpu_custom_call.1} parent=1 // pred_region
      %s675 = ssub.s32 256, 256
      %676 = vsyncadd [#allocation6], %s675
      %s678 = sshll.u32 [#allocation7], 4
      %s679 = int_to_ptr.vmem [resolvable:$true] %s678
      %681 = dma.vmem_to_hbm [thread:$0]  %s679, 256, %s2, [#allocation6]
    $region13: #{tpu_custom_call.1} parent=1 // pred_fallthru
      _
    // Predicated region
    $region14: #{tpu_custom_call.1} parent=1 // pred_check
      _
    $region15: #{tpu_custom_call.1} parent=1 // pred_check_branch
      %683 = sbr.rel (0) target = $region17
    $region16: #{tpu_custom_call.1} parent=1 // pred_region
      %684 = dma.done [#allocation6], 256
    $region17: #{tpu_custom_call.1} parent=1 // pred_fallthru
      _
    %685 = vsyncpa [#allocation5], 1
    %686 = vsyncpa [#allocation6], 1

</llo_original>
